<compile_context>
chip_gen: v5e
topology: v5e:2x2
jax: 0.10.0
libtpu: 0.0.40
codegen_flags: <defaults>
</compile_context>

<pallas_src>
import jax
import jax.numpy as jnp
from jax.experimental import pallas as pl
from jax.experimental.pallas import tpu as pltpu


def _round_up(x, m):
    return ((x + m - 1) // m) * m


def _vmem_capacity_bytes():
    try:
        return int(pltpu.get_tpu_info().vmem_capacity_bytes)
    except Exception:
        return 64 * 1024 * 1024  # conservative fallback (v7x per-TC VMEM)


def _pick_tiles(T, K, E, D, H, elem_bytes, tile_budget):
    """Pick (tT, tH): largest token tile fitting the VMEM budget, capped near the
    average routed rows per expert so tiles aren't mostly padding and so several
    token tiles exist (keeps both v7x TensorCores fed)."""
    rows_cap = max(32, _round_up(-(-(T * K) // max(E, 1)), 32))
    th_cands = [c for c in (512, 256, 128) if H % c == 0] or [H]
    tt_cands = [1024, 768, 512, 384, 256, 128, 64, 32]
    for tT in tt_cands:
        if tT > rows_cap:
            continue
        for tH in th_cands:
            foot = (2 * tT * D * elem_bytes      # x blocks (double buffered)
                    + 6 * tH * D * elem_bytes    # w1/w3/w2 blocks (double buffered)
                    + 2 * tT * D * 4             # f32 output blocks
                    + tT * D * 4                 # f32 accumulator scratch
                    + 4 * tT * 4)                # routing-weight blocks (tiny)
            if foot <= tile_budget:
                return tT, tH
    return 32, th_cands[-1]


# --------------------------- grouped expert kernel ---------------------------
# grid = (token-tile g, hidden-tile h); h is the reduction (innermost).
# The x rows, routing weights and output block depend only on g and stay
# VMEM-resident while the selected expert's weight H-tiles stream from HBM.
def _moe_grouped_kernel(tile_expert_ref, x_ref, w1_ref, w3_ref, w2_ref, gw_ref,
                        out_ref, acc_ref):
    del tile_expert_ref  # only consumed by the index_maps
    h = pl.program_id(1)

    @pl.when(h == 0)
    def _():
        acc_ref[...] = jnp.zeros_like(acc_ref)

    x = x_ref[...]                                                      # (tT, D)
    h1 = jnp.dot(x, w1_ref[0, 0], preferred_element_type=jnp.float32)  # (tT, tH) f32
    h3 = jnp.dot(x, w3_ref[0, 0], preferred_element_type=jnp.float32)  # (tT, tH) f32
    act = (h1 * jax.lax.logistic(h1)) * h3                             # SiLU(h1) * h3
    act = act * gw_ref[...]                                            # fold routing weight (tT,1)
    acc_ref[...] += jnp.dot(act.astype(x.dtype), w2_ref[0, 0],
                            preferred_element_type=jnp.float32)        # (tT, D) f32

    @pl.when(h == pl.num_programs(1) - 1)
    def _():
        out_ref[...] = acc_ref[...]


def moe_forward(x, wg, w1, w3, w2, num_experts_per_tok,
                compute_dtype=jnp.bfloat16):
    """MoeLayer.forward: x of shape [..., D] -> same shape."""
    orig_shape = x.shape
    D = x.shape[-1]
    xs = x.reshape(-1, D)
    T = xs.shape[0]
    E, _, H = w1.shape
    K = int(num_experts_per_tok)

    # -------- gate + top-k routing (plain XLA; negligible FLOPs) ------------
    logits = jnp.dot(xs.astype(jnp.float32), wg.astype(jnp.float32))    # (T, E) f32
    top_w, top_e = jax.lax.top_k(logits, K)                             # (T, K)
    top_w = jax.nn.softmax(top_w, axis=-1)                              # f32

    # -------- flatten (token, expert) pairs and sort by expert ---------------
    flat_e = top_e.reshape(-1).astype(jnp.int32)                        # (T*K,)
    flat_t = jnp.repeat(jnp.arange(T, dtype=jnp.int32), K)              # (T*K,)
    flat_w = top_w.reshape(-1)
    order = jnp.argsort(flat_e)
    s_e, s_t, s_w = flat_e[order], flat_t[order], flat_w[order]

    # -------- generation-aware tiling / VMEM budget --------------------------
    cap = _vmem_capacity_bytes()
    tile_budget = int(cap * 0.70)
    vmem_limit = int(cap * 0.85)
    elem_bytes = jnp.dtype(compute_dtype).itemsize
    tT, tH = _pick_tiles(T, K, E, D, H, elem_bytes, tile_budget)
    n_h = H // tH

    N_max = _round_up(T * K, tT) + E * tT   # worst case after per-expert tile padding
    G_max = N_max // tT

    # -------- group bookkeeping: per-expert rows, padded to tile boundaries --
    counts = jnp.bincount(s_e, length=E)                                # rows per expert
    padded = ((counts + tT - 1) // tT) * tT
    tiles_per_e = padded // tT
    tile_cum = jnp.cumsum(tiles_per_e)                                  # inclusive

    g_idx = jnp.arange(G_max, dtype=jnp.int32)
    tile_expert = jnp.sum((g_idx[:, None] >= tile_cum[None, :]).astype(jnp.int32), axis=1)
    tile_expert = jnp.minimum(tile_expert, E - 1).astype(jnp.int32)     # SMEM prefetch array

    row_start = jnp.cumsum(counts) - counts                             # exclusive cumsum
    row_start_pad = jnp.cumsum(padded) - padded

    r = jnp.arange(N_max, dtype=jnp.int32)
    e_r = tile_expert[r // tT]
    local = r - row_start_pad[e_r]
    valid = local < counts[e_r]
    src = jnp.clip(row_start[e_r] + local, 0, T * K - 1)
    g_tok = jnp.where(valid, s_t[src], 0)                               # source token per row
    g_w = jnp.where(valid, s_w[src], 0.0).astype(jnp.float32)           # routing weight per row
    dst = jnp.where(valid, g_tok, T).astype(jnp.int32)                  # scatter dst (T = dump row)

    # -------- gather tokens, cast to compute dtype, re-layout weights --------
    x_grouped = xs[g_tok].astype(compute_dtype)                         # (N_max, D)
    g_w = g_w.reshape(N_max, 1)
    # Contiguous streamed weight blocks (do once at weight-load time in a model).
    w1r = w1.astype(compute_dtype).reshape(E, D, n_h, tH).transpose(0, 2, 1, 3)
    w3r = w3.astype(compute_dtype).reshape(E, D, n_h, tH).transpose(0, 2, 1, 3)
    w2r = w2.astype(compute_dtype).reshape(E, n_h, tH, D)

    grid_spec = pltpu.PrefetchScalarGridSpec(
        num_scalar_prefetch=1,
        grid=(G_max, n_h),
        in_specs=[
            pl.BlockSpec((tT, D), lambda g, h, te: (g, 0)),                    # routed token rows
            pl.BlockSpec((1, 1, D, tH), lambda g, h, te: (te[g], h, 0, 0)),    # w1[e] H-tile
            pl.BlockSpec((1, 1, D, tH), lambda g, h, te: (te[g], h, 0, 0)),    # w3[e] H-tile
            pl.BlockSpec((1, 1, tH, D), lambda g, h, te: (te[g], h, 0, 0)),    # w2[e] H-tile
            pl.BlockSpec((tT, 1), lambda g, h, te: (g, 0)),                    # routing weights
        ],
        out_specs=pl.BlockSpec((tT, D), lambda g, h, te: (g, 0)),
        scratch_shapes=[pltpu.VMEM((tT, D), jnp.float32)],
    )
    out_grouped = pl.pallas_call(
        _moe_grouped_kernel,
        out_shape=jax.ShapeDtypeStruct((N_max, D), jnp.float32),
        grid_spec=grid_spec,
        compiler_params=pltpu.CompilerParams(
            dimension_semantics=("parallel", "arbitrary"),
            vmem_limit_bytes=vmem_limit),
    )(tile_expert, x_grouped, w1r, w3r, w2r, g_w)

    # -------- un-permute: scatter-add expert outputs back to tokens ----------
    results = jnp.zeros((T + 1, D), jnp.float32).at[dst].add(out_grouped)
    return results[:T].astype(x.dtype).reshape(orig_shape)


# ---------------------------- pure-JAX reference -----------------------------
def moe_reference(x, wg, w1, w3, w2, num_experts_per_tok):
    orig_shape = x.shape
    D = x.shape[-1]
    xs = x.reshape(-1, D)
    T = xs.shape[0]
    E = wg.shape[1]

    logits = jnp.dot(xs.astype(jnp.float32), wg.astype(jnp.float32))
    weights, selected = jax.lax.top_k(logits, num_experts_per_tok)
    weights = jax.nn.softmax(weights, axis=-1)                          # f32
    rows = jnp.arange(T)[:, None]
    wr = jnp.zeros((T, E), jnp.float32).at[rows, selected].add(weights)

    xf = xs.astype(jnp.float32)
    results = jnp.zeros((T, D), jnp.float32)
    for e in range(E):
        hidden = jax.nn.silu(xf @ w1[e].astype(jnp.float32)) * (xf @ w3[e].astype(jnp.float32))
        y = hidden @ w2[e].astype(jnp.float32)
        results = results + wr[:, e:e + 1] * y
    return results.astype(x.dtype).reshape(orig_shape)


# ----------------------------------- main -------------------------------------
if __name__ == "__main__":
    B, S, D, H = 2, 8, 32, 64          # batch, seq, model dim, ffn hidden dim
    E, K = 4, 2                        # num_experts, num_experts_per_tok

    key = jax.random.PRNGKey(0)
    kx, kg, k1, k2, k3 = jax.random.split(key, 5)

    dt = jnp.bfloat16                  # Mistral-like precision (kernel: bf16 MXU, f32 accum)
    x = jax.random.normal(kx, (B, S, D), dtype=jnp.float32).astype(dt)
    wg = (jax.random.normal(kg, (D, E), dtype=jnp.float32) * 0.1).astype(dt)
    w1 = (jax.random.normal(k1, (E, D, H), dtype=jnp.float32) * (1.0 / D ** 0.5)).astype(dt)
    w3 = (jax.random.normal(k3, (E, D, H), dtype=jnp.float32) * (1.0 / D ** 0.5)).astype(dt)
    w2 = (jax.random.normal(k2, (E, H, D), dtype=jnp.float32) * (1.0 / H ** 0.5)).astype(dt)

    out = moe_forward(x, wg, w1, w3, w2, K)
    out = jax.block_until_ready(out)

    ref = moe_reference(x, wg, w1, w3, w2, K)
    assert out.shape == x.shape
    of, rf = out.astype(jnp.float32), ref.astype(jnp.float32)
    max_err = float(jnp.max(jnp.abs(of - rf)))
    # bf16 matmul inputs vs the all-f32 reference -> loosened tolerance (still
    # far below the O(1) errors a routing/tiling bug would produce).
    assert jnp.allclose(of, rf, rtol=4e-2, atol=4e-2), f"mismatch vs reference (max err {max_err})"

    print("KERNEL_OK")
</pallas_src>

<mosaic_0001>
module attributes {stable_mosaic.version = 11 : i64} {
  func.func @_moe_grouped_kernel(%arg0: i32, %arg1: i32, %arg2: memref<5xi32, #tpu.memory_space<smem>>, %arg3: memref<32x32xbf16, #tpu.memory_space<vmem>>, %arg4: memref<1x1x32x64xbf16, #tpu.memory_space<vmem>>, %arg5: memref<1x1x32x64xbf16, #tpu.memory_space<vmem>>, %arg6: memref<1x1x64x32xbf16, #tpu.memory_space<vmem>>, %arg7: memref<32x1xf32, #tpu.memory_space<vmem>>, %arg8: memref<32x32xf32, #tpu.memory_space<vmem>>, %arg9: memref<32x32xf32, #tpu.memory_space<vmem>>) attributes {dimension_semantics = [#tpu.dimension_semantics<parallel>, #tpu.dimension_semantics<arbitrary>], iteration_bounds = array<i64: 5, 1>, scalar_prefetch = 1 : i64, scratch_operands = 1 : i64, tpu.core_type = #tpu.core_type<tc>, window_params = [{transform_indices = @transform_0, window_bounds = array<i64: 32, 32>}, {transform_indices = @transform_1, window_bounds = array<i64: 1, 1, 32, 64>}, {transform_indices = @transform_2, window_bounds = array<i64: 1, 1, 32, 64>}, {transform_indices = @transform_3, window_bounds = array<i64: 1, 1, 64, 32>}, {transform_indices = @transform_4, window_bounds = array<i64: 32, 1>}, {transform_indices = @transform_5, window_bounds = array<i64: 32, 32>}]} {
    %c0_i32 = arith.constant 0 : i32
    %0 = arith.cmpi eq, %arg1, %c0_i32 : i32
    %1 = arith.extui %0 : i1 to i32
    %c0_i32_0 = arith.constant 0 : i32
    %2 = arith.cmpi ne, %1, %c0_i32_0 : i32
    scf.if %2 {
      %cst_25 = arith.constant 0.000000e+00 : f32
      %30 = vector.broadcast %cst_25 : f32 to vector<32x32xf32>
      %c0_26 = arith.constant 0 : index
      %c0_27 = arith.constant 0 : index
      %31 = vector.load %arg9[%c0_26, %c0_27] : memref<32x32xf32, #tpu.memory_space<vmem>>, vector<32x32xf32>
      tpu.vector_store %arg9[%c0_26, %c0_27], %30 {strides = array<i32>} : memref<32x32xf32, #tpu.memory_space<vmem>>, vector<32x32xf32>,
    } else {
    }
    %c0 = arith.constant 0 : index
    %c0_1 = arith.constant 0 : index
    %3 = vector.load %arg3[%c0, %c0_1] : memref<32x32xbf16, #tpu.memory_space<vmem>>, vector<32x32xbf16>
    %c0_2 = arith.constant 0 : index
    %c0_3 = arith.constant 0 : index
    %c0_4 = arith.constant 0 : index
    %c0_5 = arith.constant 0 : index
    %4 = vector.load %arg4[%c0_2, %c0_3, %c0_4, %c0_5] : memref<1x1x32x64xbf16, #tpu.memory_space<vmem>>, vector<1x1x32x64xbf16>
    %5 = vector.shape_cast %4 : vector<1x1x32x64xbf16> to vector<32x64xbf16>
    %cst = arith.constant dense<0.000000e+00> : vector<32x64xf32>
    %6 = tpu.matmul %3, %5, %cst {dimension_numbers = #tpu.dot_dimension_numbers<[1], [0], [0], [1], [0, 0, 1, 1], [], []>} : vector<32x32xbf16>, vector<32x64xbf16>, vector<32x64xf32> -> vector<32x64xf32>
    %c0_6 = arith.constant 0 : index
    %c0_7 = arith.constant 0 : index
    %c0_8 = arith.constant 0 : index
    %c0_9 = arith.constant 0 : index
    %7 = vector.load %arg5[%c0_6, %c0_7, %c0_8, %c0_9] : memref<1x1x32x64xbf16, #tpu.memory_space<vmem>>, vector<1x1x32x64xbf16>
    %8 = vector.shape_cast %7 : vector<1x1x32x64xbf16> to vector<32x64xbf16>
    %cst_10 = arith.constant dense<0.000000e+00> : vector<32x64xf32>
    %9 = tpu.matmul %3, %8, %cst_10 {dimension_numbers = #tpu.dot_dimension_numbers<[1], [0], [0], [1], [0, 0, 1, 1], [], []>} : vector<32x32xbf16>, vector<32x64xbf16>, vector<32x64xf32> -> vector<32x64xf32>
    %10 = arith.negf %6 : vector<32x64xf32>
    %11 = math.exp %10 : vector<32x64xf32>
    %cst_11 = arith.constant 1.000000e+00 : f32
    %12 = vector.broadcast %cst_11 : f32 to vector<32x64xf32>
    %13 = arith.addf %12, %11 : vector<32x64xf32>
    %14 = arith.divf %12, %13 : vector<32x64xf32>
    %15 = arith.mulf %6, %14 : vector<32x64xf32>
    %16 = arith.mulf %15, %9 : vector<32x64xf32>
    %c0_12 = arith.constant 0 : index
    %c0_13 = arith.constant 0 : index
    %17 = vector.load %arg7[%c0_12, %c0_13] : memref<32x1xf32, #tpu.memory_space<vmem>>, vector<32x1xf32>
    %18 = vector.broadcast %17 : vector<32x1xf32> to vector<32x64xf32>
    %19 = arith.mulf %16, %18 : vector<32x64xf32>
    %c0_14 = arith.constant 0 : index
    %c0_15 = arith.constant 0 : index
    %20 = vector.load %arg9[%c0_14, %c0_15] : memref<32x32xf32, #tpu.memory_space<vmem>>, vector<32x32xf32>
    %21 = arith.truncf %19 : vector<32x64xf32> to vector<32x64xbf16>
    %c0_16 = arith.constant 0 : index
    %c0_17 = arith.constant 0 : index
    %c0_18 = arith.constant 0 : index
    %c0_19 = arith.constant 0 : index
    %22 = vector.load %arg6[%c0_16, %c0_17, %c0_18, %c0_19] : memref<1x1x64x32xbf16, #tpu.memory_space<vmem>>, vector<1x1x64x32xbf16>
    %23 = vector.shape_cast %22 : vector<1x1x64x32xbf16> to vector<64x32xbf16>
    %cst_20 = arith.constant dense<0.000000e+00> : vector<32x32xf32>
    %24 = tpu.matmul %21, %23, %cst_20 {dimension_numbers = #tpu.dot_dimension_numbers<[1], [0], [0], [1], [0, 0, 1, 1], [], []>} : vector<32x64xbf16>, vector<64x32xbf16>, vector<32x32xf32> -> vector<32x32xf32>
    %25 = arith.addf %20, %24 : vector<32x32xf32>
    %c0_21 = arith.constant 0 : index
    %c0_22 = arith.constant 0 : index
    %26 = vector.load %arg9[%c0_21, %c0_22] : memref<32x32xf32, #tpu.memory_space<vmem>>, vector<32x32xf32>
    tpu.vector_store %arg9[%c0_21, %c0_22], %25 {strides = array<i32>} : memref<32x32xf32, #tpu.memory_space<vmem>>, vector<32x32xf32>,
    %c0_i32_23 = arith.constant 0 : i32
    %27 = arith.cmpi eq, %arg1, %c0_i32_23 : i32
    %28 = arith.extui %27 : i1 to i32
    %c0_i32_24 = arith.constant 0 : i32
    %29 = arith.cmpi ne, %28, %c0_i32_24 : i32
    scf.if %29 {
      %c0_25 = arith.constant 0 : index
      %c0_26 = arith.constant 0 : index
      %30 = vector.load %arg9[%c0_25, %c0_26] : memref<32x32xf32, #tpu.memory_space<vmem>>, vector<32x32xf32>
      %c0_27 = arith.constant 0 : index
      %c0_28 = arith.constant 0 : index
      %31 = vector.load %arg8[%c0_27, %c0_28] : memref<32x32xf32, #tpu.memory_space<vmem>>, vector<32x32xf32>
      tpu.vector_store %arg8[%c0_27, %c0_28], %30 {strides = array<i32>} : memref<32x32xf32, #tpu.memory_space<vmem>>, vector<32x32xf32>,
    } else {
    }
    return
  }
  func.func @transform_0(%arg0: i32, %arg1: i32, %arg2: memref<5xi32, #tpu.memory_space<smem>>) -> (i32, i32) {
    %c0_i32 = arith.constant 0 : i32
    %c0_i32_0 = arith.constant 0 : i32
    return %arg0, %c0_i32 : i32, i32
  }
  func.func @transform_1(%arg0: i32, %arg1: i32, %arg2: memref<5xi32, #tpu.memory_space<smem>>) -> (i32, i32, i32, i32) {
    %0 = arith.index_cast %arg0 : i32 to index
    %1 = memref.load %arg2[%0] : memref<5xi32, #tpu.memory_space<smem>>
    %c0_i32 = arith.constant 0 : i32
    %c0_i32_0 = arith.constant 0 : i32
    %c0_i32_1 = arith.constant 0 : i32
    return %1, %arg1, %c0_i32, %c0_i32_0 : i32, i32, i32, i32
  }
  func.func @transform_2(%arg0: i32, %arg1: i32, %arg2: memref<5xi32, #tpu.memory_space<smem>>) -> (i32, i32, i32, i32) {
    %0 = arith.index_cast %arg0 : i32 to index
    %1 = memref.load %arg2[%0] : memref<5xi32, #tpu.memory_space<smem>>
    %c0_i32 = arith.constant 0 : i32
    %c0_i32_0 = arith.constant 0 : i32
    %c0_i32_1 = arith.constant 0 : i32
    return %1, %arg1, %c0_i32, %c0_i32_0 : i32, i32, i32, i32
  }
  func.func @transform_3(%arg0: i32, %arg1: i32, %arg2: memref<5xi32, #tpu.memory_space<smem>>) -> (i32, i32, i32, i32) {
    %0 = arith.index_cast %arg0 : i32 to index
    %1 = memref.load %arg2[%0] : memref<5xi32, #tpu.memory_space<smem>>
    %c0_i32 = arith.constant 0 : i32
    %c0_i32_0 = arith.constant 0 : i32
    %c0_i32_1 = arith.constant 0 : i32
    return %1, %arg1, %c0_i32, %c0_i32_0 : i32, i32, i32, i32
  }
  func.func @transform_4(%arg0: i32, %arg1: i32, %arg2: memref<5xi32, #tpu.memory_space<smem>>) -> (i32, i32) {
    %c0_i32 = arith.constant 0 : i32
    %c0_i32_0 = arith.constant 0 : i32
    return %arg0, %c0_i32 : i32, i32
  }
  func.func @transform_5(%arg0: i32, %arg1: i32, %arg2: memref<5xi32, #tpu.memory_space<smem>>) -> (i32, i32) {
    %c0_i32 = arith.constant 0 : i32
    %c0_i32_0 = arith.constant 0 : i32
    return %arg0, %c0_i32 : i32, i32
  }
}

</mosaic_0001>

<llo_original>
// kernel: tpu_custom_call.1
$region0: #{tpu_custom_call.1}
  #allocation0 [shape = 'u32[]', space=smem, size = 0x4, offset = 0x4, fixed_abs, tag = 'smem constant byte address 0x4 - core index']
  #allocation1 [shape = 'u32[72,128]{1,0:T(1,128)}', space=vmem, size = 0x9000, scoped, tag = 'internal scratch']
  #allocation2 [shape = 'f32[32,32]{1,0:T(8,128)}', space=vmem, size = 0x4000, scoped, tag = 'scratch operand']
  #allocation3 [shape = 's32[1]{0}', space=sflag, size = 0x4, scoped, tag = 'scoped memory for tpu_custom_call.1']
  #allocation4 [shape = 'u8[512]{0}', space=smem, size = 0x200, scoped, tag = 'prefetched SMEM operand 0']
  %s0 = inlined_call_operand.vmem [shape: s32[5], index: 0, kind: input, shape index: {}]
  %s1 = inlined_call_operand.vmem [shape: bf16[160,32], index: 1, kind: input, shape index: {}]
  %s2 = inlined_call_operand.vmem [shape: bf16[4,1,32,64], index: 2, kind: input, shape index: {}]
  %s3 = inlined_call_operand.vmem [shape: bf16[4,1,32,64], index: 3, kind: input, shape index: {}]
  %s4 = inlined_call_operand.vmem [shape: bf16[4,1,64,32], index: 4, kind: input, shape index: {}]
  %s5 = inlined_call_operand.vmem [shape: f32[160,1], index: 5, kind: input, shape index: {}]
  %s6 = inlined_call_operand.vmem [shape: f32[160,32], index: 6, kind: output, shape index: {}]
  %s7 = sld [smem:[#allocation0]]
  $region61: #{tpu_custom_call.1} parent=0
    _
  %s9 = ssub.s32 1, %s7
  %s10 = scalar_select 0, %s9, %s7
  %s12 = sshll.u32 %s0, 4
  %s13 = int_to_ptr.vmem [resolvable:$true] %s12
  %15 = dma.vmem_to_smem %s13, 16, [#allocation4], [#allocation3]
  %17 = dma.done [#allocation3], 16
  %18 = sfence
  loop: start=0, step=1, limit=7
  $region2: #{tpu_custom_call.1} parent=0 // loop_pre_header
    _
  $region3: #{tpu_custom_call.1} parent=0 // loop_header
    %s20 = sphi 0, %s24
    %p21 = scmp.ge.s32.totalorder %s20, 7
    %s27 = sphi 0, %s39
    %s28 = sphi 0, %s35
    %s29 = sphi 0, %s27
    %s30 = sphi 0, %s28
    %s31 = sphi 0, %s29
    %s32 = sphi 0, %s30
    %s42 = sphi 0, %s44
    %s45 = sphi 0, %s42
    %s46 = sphi 0, %s45
    %s62 = sphi 0, %s46
    %s72 = sphi 0, %s74
    %s75 = sphi 0, %s72
    %s76 = sphi 0, %s75
    %s92 = sphi 0, %s76
    %s102 = sphi 0, %s104
    %s105 = sphi 0, %s102
    %s106 = sphi 0, %s105
    %s122 = sphi 0, %s106
    %s132 = sphi 0, %s134
    %s135 = sphi 0, %s132
    %s136 = sphi 0, %s135
    %s152 = sphi 0, %s136
    %s158 = sphi 0, %s160
    %s161 = sphi 0, %s158
    %s162 = sphi 0, %s161
    %s178 = sphi 0, %s162
    %s184 = sphi 0, %s186
    %s187 = sphi 0, %s184
    %s188 = sphi 0, %s187
    %s204 = sphi 0, %s188
  $region4: #{tpu_custom_call.1} parent=0 // loop_header_branch
    %23 = sbr.rel (%p21) target = $region8
  $region5: #{tpu_custom_call.1} parent=0 // loop_body
    %s25 = ssub.s32 %s20, 1
    %s26 = ssub.s32 %s20, 2
    %s33 = sadd.s32 1, %s28
    %p34 = scmp.ge.s32.totalorder %s33, 1
    %s35 = scalar_select %p34, 0, %s33
    %s36 = sadd.s32 1, %s27
    %s37 = scalar_select %p34, %s36, %s27
    %p38 = scmp.ge.s32.totalorder %s37, 5
    %s39 = scalar_select %p38, 0, %s37
    %s40 = ssub.s32 %s27, %s39
    %p41 = scmp.eq.s32.totalorder %s40, 0
    %s43 = sadd.s32 %s42, 1
    %s44 = scalar_select %p41, %s42, %s43
    %p47 = pneg %p41
    %p48 = scmp.eq.s32.totalorder %s20, 4
    %p49 = por %p47, %p48
    %p50 = scmp.ne.s32.totalorder %s42, %s45
    %p51 = scmp.eq.s32.totalorder %s20, 0
    %p52 = por %p50, %p51
    %p53 = scmp.ne.s32.totalorder %s42, %s45
    %p54 = scmp.eq.s32.totalorder %s25, 4
    %p55 = por %p53, %p54
    %p56 = scmp.ne.s32.totalorder %s45, %s46
    %p57 = scmp.eq.s32.totalorder %s25, 0
    %p58 = por %p56, %p57
    %p59 = scmp.ne.s32.totalorder %s45, %s46
    %p60 = scmp.eq.s32.totalorder %s26, 4
    %p61 = por %p59, %p60
    %p63 = scmp.ne.s32.totalorder %s46, %s62
    %p64 = scmp.eq.s32.totalorder %s26, 0
    %p65 = por %p63, %p64
    %s66 = sld [smem:[#allocation4 + %s27]]
    %s67 = sld [smem:[#allocation4 + %s39]]
    %s68 = ssub.s32 %s66, %s67
    %s69 = ssub.s32 %s28, %s35
    %s70 = sor.u32 %s68, %s69
    %p71 = scmp.eq.s32.totalorder %s70, 0
    %s73 = sadd.s32 %s72, 1
    %s74 = scalar_select %p71, %s72, %s73
    %p77 = pneg %p71
    %p78 = scmp.eq.s32.totalorder %s20, 4
    %p79 = por %p77, %p78
    %p80 = scmp.ne.s32.totalorder %s72, %s75
    %p81 = scmp.eq.s32.totalorder %s20, 0
    %p82 = por %p80, %p81
    %p83 = scmp.ne.s32.totalorder %s72, %s75
    %p84 = scmp.eq.s32.totalorder %s25, 4
    %p85 = por %p83, %p84
    %p86 = scmp.ne.s32.totalorder %s75, %s76
    %p87 = scmp.eq.s32.totalorder %s25, 0
    %p88 = por %p86, %p87
    %p89 = scmp.ne.s32.totalorder %s75, %s76
    %p90 = scmp.eq.s32.totalorder %s26, 4
    %p91 = por %p89, %p90
    %p93 = scmp.ne.s32.totalorder %s76, %s92
    %p94 = scmp.eq.s32.totalorder %s26, 0
    %p95 = por %p93, %p94
    %s96 = sld [smem:[#allocation4 + %s27]]
    %s97 = sld [smem:[#allocation4 + %s39]]
    %s98 = ssub.s32 %s96, %s97
    %s99 = ssub.s32 %s28, %s35
    %s100 = sor.u32 %s98, %s99
    %p101 = scmp.eq.s32.totalorder %s100, 0
    %s103 = sadd.s32 %s102, 1
    %s104 = scalar_select %p101, %s102, %s103
    %p107 = pneg %p101
    %p108 = scmp.eq.s32.totalorder %s20, 4
    %p109 = por %p107, %p108
    %p110 = scmp.ne.s32.totalorder %s102, %s105
    %p111 = scmp.eq.s32.totalorder %s20, 0
    %p112 = por %p110, %p111
    %p113 = scmp.ne.s32.totalorder %s102, %s105
    %p114 = scmp.eq.s32.totalorder %s25, 4
    %p115 = por %p113, %p114
    %p116 = scmp.ne.s32.totalorder %s105, %s106
    %p117 = scmp.eq.s32.totalorder %s25, 0
    %p118 = por %p116, %p117
    %p119 = scmp.ne.s32.totalorder %s105, %s106
    %p120 = scmp.eq.s32.totalorder %s26, 4
    %p121 = por %p119, %p120
    %p123 = scmp.ne.s32.totalorder %s106, %s122
    %p124 = scmp.eq.s32.totalorder %s26, 0
    %p125 = por %p123, %p124
    %s126 = sld [smem:[#allocation4 + %s27]]
    %s127 = sld [smem:[#allocation4 + %s39]]
    %s128 = ssub.s32 %s126, %s127
    %s129 = ssub.s32 %s28, %s35
    %s130 = sor.u32 %s128, %s129
    %p131 = scmp.eq.s32.totalorder %s130, 0
    %s133 = sadd.s32 %s132, 1
    %s134 = scalar_select %p131, %s132, %s133
    %p137 = pneg %p131
    %p138 = scmp.eq.s32.totalorder %s20, 4
    %p139 = por %p137, %p138
    %p140 = scmp.ne.s32.totalorder %s132, %s135
    %p141 = scmp.eq.s32.totalorder %s20, 0
    %p142 = por %p140, %p141
    %p143 = scmp.ne.s32.totalorder %s132, %s135
    %p144 = scmp.eq.s32.totalorder %s25, 4
    %p145 = por %p143, %p144
    %p146 = scmp.ne.s32.totalorder %s135, %s136
    %p147 = scmp.eq.s32.totalorder %s25, 0
    %p148 = por %p146, %p147
    %p149 = scmp.ne.s32.totalorder %s135, %s136
    %p150 = scmp.eq.s32.totalorder %s26, 4
    %p151 = por %p149, %p150
    %p153 = scmp.ne.s32.totalorder %s136, %s152
    %p154 = scmp.eq.s32.totalorder %s26, 0
    %p155 = por %p153, %p154
    %s156 = ssub.s32 %s27, %s39
    %p157 = scmp.eq.s32.totalorder %s156, 0
    %s159 = sadd.s32 %s158, 1
    %s160 = scalar_select %p157, %s158, %s159
    %p163 = pneg %p157
    %p164 = scmp.eq.s32.totalorder %s20, 4
    %p165 = por %p163, %p164
    %p166 = scmp.ne.s32.totalorder %s158, %s161
    %p167 = scmp.eq.s32.totalorder %s20, 0
    %p168 = por %p166, %p167
    %p169 = scmp.ne.s32.totalorder %s158, %s161
    %p170 = scmp.eq.s32.totalorder %s25, 4
    %p171 = por %p169, %p170
    %p172 = scmp.ne.s32.totalorder %s161, %s162
    %p173 = scmp.eq.s32.totalorder %s25, 0
    %p174 = por %p172, %p173
    %p175 = scmp.ne.s32.totalorder %s161, %s162
    %p176 = scmp.eq.s32.totalorder %s26, 4
    %p177 = por %p175, %p176
    %p179 = scmp.ne.s32.totalorder %s162, %s178
    %p180 = scmp.eq.s32.totalorder %s26, 0
    %p181 = por %p179, %p180
    %s182 = ssub.s32 %s27, %s39
    %p183 = scmp.eq.s32.totalorder %s182, 0
    %s185 = sadd.s32 %s184, 1
    %s186 = scalar_select %p183, %s184, %s185
    %p189 = pneg %p183
    %p190 = scmp.eq.s32.totalorder %s20, 4
    %p191 = por %p189, %p190
    %p192 = scmp.ne.s32.totalorder %s184, %s187
    %p193 = scmp.eq.s32.totalorder %s20, 0
    %p194 = por %p192, %p193
    %p195 = scmp.ne.s32.totalorder %s184, %s187
    %p196 = scmp.eq.s32.totalorder %s25, 4
    %p197 = por %p195, %p196
    %p198 = scmp.ne.s32.totalorder %s187, %s188
    %p199 = scmp.eq.s32.totalorder %s25, 0
    %p200 = por %p198, %p199
    %p201 = scmp.ne.s32.totalorder %s187, %s188
    %p202 = scmp.eq.s32.totalorder %s26, 4
    %p203 = por %p201, %p202
    %p205 = scmp.ne.s32.totalorder %s188, %s204
    %p206 = scmp.eq.s32.totalorder %s26, 0
    %p207 = por %p205, %p206
    %p208 = scmp.le.s32.totalorder 1, %s20
    %p209 = scmp.lt.s32.totalorder %s20, 6
    %p210 = pnand %p208, %p209
    %p211 = pneg %p210
    // Predicated region
    $region9: #{tpu_custom_call.1} parent=5 // pred_check
      _
    $region10: #{tpu_custom_call.1} parent=5 // pred_check_branch
      %213 = sbr.rel (%p210) target = $region12
    $region11: #{tpu_custom_call.1} parent=5 // pred_region
      %s214 = ssub.s32 %s20, 1
    $region12: #{tpu_custom_call.1} parent=5 // pred_fallthru
      _
    %p215 = scmp.lt.s32.totalorder %s20, 5
    // Predicated region
    $region13: #{tpu_custom_call.1} parent=5 // pred_check
      %p216 = pneg %p215
    $region14: #{tpu_custom_call.1} parent=5 // pred_check_branch
      %218 = sbr.rel (%p216) target = $region16
    $region15: #{tpu_custom_call.1} parent=5 // pred_region
      // Predicated region
      $region17: #{tpu_custom_call.1} parent=15 // pred_check
        %p219 = pneg %p52
      $region18: #{tpu_custom_call.1} parent=15 // pred_check_branch
        %221 = sbr.rel (%p219) target = $region20
      $region19: #{tpu_custom_call.1} parent=15 // pred_region
        %s222 = smul.u32 4, %s27
        %p223 = scmp.lt.s32.totalorder %s222, 19
        %s224 = scalar_select %p223, %s222, 19
        %s225 = smul.addr %s224, 4
        %s226 = scalar_lea.vmem %s1, %s225
        %s227 = smul.u32 4, %s27
      $region20: #{tpu_custom_call.1} parent=15 // pred_fallthru
        _
      // Predicated region
      $region21: #{tpu_custom_call.1} parent=15 // pred_check
        %p228 = pneg %p82
      $region22: #{tpu_custom_call.1} parent=15 // pred_check_branch
        %230 = sbr.rel (%p228) target = $region24
      $region23: #{tpu_custom_call.1} parent=15 // pred_region
        %s231 = sld [smem:[#allocation4 + %s27]]
        %p232 = scmp.lt.s32.totalorder %s231, 3
        %s233 = scalar_select %p232, %s231, 3
        %p234 = scmp.lt.s32.totalorder %s28, 0
        %s235 = scalar_select %p234, %s28, 0
        %s236 = smul.addr %s235, 4
        %s237 = smul.addr %s233, 4
        %s238 = sadd.s32 %s236, %s237
        %s239 = smul.addr %s238, 4
        %s240 = scalar_lea.vmem %s2, %s239
        %s241 = sld [smem:[#allocation4 + %s27]]
      $region24: #{tpu_custom_call.1} parent=15 // pred_fallthru
        _
      // Predicated region
      $region25: #{tpu_custom_call.1} parent=15 // pred_check
        %p242 = pneg %p112
      $region26: #{tpu_custom_call.1} parent=15 // pred_check_branch
        %244 = sbr.rel (%p242) target = $region28
      $region27: #{tpu_custom_call.1} parent=15 // pred_region
        %s245 = sld [smem:[#allocation4 + %s27]]
        %p246 = scmp.lt.s32.totalorder %s245, 3
        %s247 = scalar_select %p246, %s245, 3
        %p248 = scmp.lt.s32.totalorder %s28, 0
        %s249 = scalar_select %p248, %s28, 0
        %s250 = smul.addr %s249, 4
        %s251 = smul.addr %s247, 4
        %s252 = sadd.s32 %s250, %s251
        %s253 = smul.addr %s252, 4
        %s254 = scalar_lea.vmem %s3, %s253
        %s255 = sld [smem:[#allocation4 + %s27]]
      $region28: #{tpu_custom_call.1} parent=15 // pred_fallthru
        _
      // Predicated region
      $region29: #{tpu_custom_call.1} parent=15 // pred_check
        %p256 = pneg %p142
      $region30: #{tpu_custom_call.1} parent=15 // pred_check_branch
        %258 = sbr.rel (%p256) target = $region32
      $region31: #{tpu_custom_call.1} parent=15 // pred_region
        %s259 = sld [smem:[#allocation4 + %s27]]
        %p260 = scmp.lt.s32.totalorder %s259, 3
        %s261 = scalar_select %p260, %s259, 3
        %p262 = scmp.lt.s32.totalorder %s28, 0
        %s263 = scalar_select %p262, %s28, 0
        %s264 = smul.addr %s263, 8
        %s265 = smul.addr %s261, 8
        %s266 = sadd.s32 %s264, %s265
        %s267 = smul.addr %s266, 4
        %s268 = scalar_lea.vmem %s4, %s267
        %s269 = sld [smem:[#allocation4 + %s27]]
      $region32: #{tpu_custom_call.1} parent=15 // pred_fallthru
        _
      // Predicated region
      $region33: #{tpu_custom_call.1} parent=15 // pred_check
        %p270 = pneg %p168
      $region34: #{tpu_custom_call.1} parent=15 // pred_check_branch
        %272 = sbr.rel (%p270) target = $region36
      $region35: #{tpu_custom_call.1} parent=15 // pred_region
        %s273 = smul.u32 4, %s27
        %p274 = scmp.lt.s32.totalorder %s273, 19
        %s275 = scalar_select %p274, %s273, 19
        %s276 = smul.addr %s275, 8
        %s277 = scalar_lea.vmem %s5, %s276
        %s278 = smul.u32 4, %s27
      $region36: #{tpu_custom_call.1} parent=15 // pred_fallthru
        _
    $region16: #{tpu_custom_call.1} parent=5 // pred_fallthru
      _
    %p279 = scmp.le.s32.totalorder 1, %s20
    %p280 = scmp.lt.s32.totalorder %s20, 6
    %p281 = pnand %p279, %p280
    %p282 = pneg %p281
    // Predicated region
    $region37: #{tpu_custom_call.1} parent=5 // pred_check
      _
    $region38: #{tpu_custom_call.1} parent=5 // pred_check_branch
      %284 = sbr.rel (%p281) target = $region40
    $region39: #{tpu_custom_call.1} parent=5 // pred_region
      %s285 = ssub.s32 %s20, 1
      %s286 = smul.u32 4, %s29
      %p287 = scmp.lt.s32.totalorder %s286, 19
      %s288 = scalar_select %p287, %s286, 19
      %s289 = smul.addr %s288, 4
      %s290 = scalar_lea.vmem %s1, %s289
      %p291 = pneg %p58
      %p292 = pneg %p55
      %s293 = sld [smem:[#allocation4 + %s29]]
      %p294 = scmp.lt.s32.totalorder %s293, 3
      %s295 = scalar_select %p294, %s293, 3
      %p296 = scmp.lt.s32.totalorder %s30, 0
      %s297 = scalar_select %p296, %s30, 0
      %s298 = smul.addr %s297, 4
      %s299 = smul.addr %s295, 4
      %s300 = sadd.s32 %s298, %s299
      %s301 = smul.addr %s300, 4
      %s302 = scalar_lea.vmem %s2, %s301
      %p303 = pneg %p88
      %p304 = pneg %p85
      %s305 = sld [smem:[#allocation4 + %s29]]
      %p306 = scmp.lt.s32.totalorder %s305, 3
      %s307 = scalar_select %p306, %s305, 3
      %p308 = scmp.lt.s32.totalorder %s30, 0
      %s309 = scalar_select %p308, %s30, 0
      %s310 = smul.addr %s309, 4
      %s311 = smul.addr %s307, 4
      %s312 = sadd.s32 %s310, %s311
      %s313 = smul.addr %s312, 4
      %s314 = scalar_lea.vmem %s3, %s313
      %p315 = pneg %p118
      %p316 = pneg %p115
      %s317 = sld [smem:[#allocation4 + %s29]]
      %p318 = scmp.lt.s32.totalorder %s317, 3
      %s319 = scalar_select %p318, %s317, 3
      %p320 = scmp.lt.s32.totalorder %s30, 0
      %s321 = scalar_select %p320, %s30, 0
      %s322 = smul.addr %s321, 8
      %s323 = smul.addr %s319, 8
      %s324 = sadd.s32 %s322, %s323
      %s325 = smul.addr %s324, 4
      %s326 = scalar_lea.vmem %s4, %s325
      %p327 = pneg %p148
      %p328 = pneg %p145
      %s329 = smul.u32 4, %s29
      %p330 = scmp.lt.s32.totalorder %s329, 19
      %s331 = scalar_select %p330, %s329, 19
      %s332 = smul.addr %s331, 8
      %s333 = scalar_lea.vmem %s5, %s332
      %p334 = pneg %p174
      %p335 = pneg %p171
      %p336 = pneg %p200
      %p337 = pneg %p197
      %s338 = smul.u32 4, %s29
      %p339 = scmp.lt.s32.totalorder %s338, 19
      %s340 = scalar_select %p339, %s338, 19
      %s341 = smul.addr %s340, 8
      %s342 = scalar_lea.vmem %s6, %s341
      %s343 = smul.u32 4, %s29
      %p344 = scmp.lt.s32.totalorder %s343, 19
      %s345 = scalar_select %p344, %s343, 19
      %s346 = smul.addr %s345, 4
      %s347 = scalar_lea.vmem %s1, %s346
      %s348 = smul.u32 4, %s29
      %s349 = sld [smem:[#allocation4 + %s29]]
      %p350 = scmp.lt.s32.totalorder %s349, 3
      %s351 = scalar_select %p350, %s349, 3
      %p352 = scmp.lt.s32.totalorder %s30, 0
      %s353 = scalar_select %p352, %s30, 0
      %s354 = smul.addr %s353, 4
      %s355 = smul.addr %s351, 4
      %s356 = sadd.s32 %s354, %s355
      %s357 = smul.addr %s356, 4
      %s358 = scalar_lea.vmem %s2, %s357
      %s359 = sld [smem:[#allocation4 + %s29]]
      %s360 = sld [smem:[#allocation4 + %s29]]
      %p361 = scmp.lt.s32.totalorder %s360, 3
      %s362 = scalar_select %p361, %s360, 3
      %p363 = scmp.lt.s32.totalorder %s30, 0
      %s364 = scalar_select %p363, %s30, 0
      %s365 = smul.addr %s364, 4
      %s366 = smul.addr %s362, 4
      %s367 = sadd.s32 %s365, %s366
      %s368 = smul.addr %s367, 4
      %s369 = scalar_lea.vmem %s3, %s368
      %s370 = sld [smem:[#allocation4 + %s29]]
      %s371 = sld [smem:[#allocation4 + %s29]]
      %p372 = scmp.lt.s32.totalorder %s371, 3
      %s373 = scalar_select %p372, %s371, 3
      %p374 = scmp.lt.s32.totalorder %s30, 0
      %s375 = scalar_select %p374, %s30, 0
      %s376 = smul.addr %s375, 8
      %s377 = smul.addr %s373, 8
      %s378 = sadd.s32 %s376, %s377
      %s379 = smul.addr %s378, 4
      %s380 = scalar_lea.vmem %s4, %s379
      %s381 = sld [smem:[#allocation4 + %s29]]
      %s382 = smul.u32 4, %s29
      %p383 = scmp.lt.s32.totalorder %s382, 19
      %s384 = scalar_select %p383, %s382, 19
      %s385 = smul.addr %s384, 8
      %s386 = scalar_lea.vmem %s5, %s385
      %s387 = smul.u32 4, %s29
      %s388 = smul.u32 4, %s29
      %p389 = scmp.lt.s32.totalorder %s388, 19
      %s390 = scalar_select %p389, %s388, 19
      %s391 = smul.addr %s390, 8
      %s392 = scalar_lea.vmem %s6, %s391
      %s393 = smul.u32 4, %s29
      %p395 = scmp.eq.s32.totalorder %s30, 0
      // Predicated region
      $region41: #{tpu_custom_call.1} parent=39 // pred_check
        %p396 = pneg %p395
      $region42: #{tpu_custom_call.1} parent=39 // pred_check_branch
        %398 = sbr.rel (%p396) target = $region44
      $region43: #{tpu_custom_call.1} parent=39 // pred_region
        %vm399 = vcmask 261120
        %400 = vst.msk [vmem:[#allocation2] sm:$0xff] %vm399, 0.0
        %401 = vst.msk [vmem:[#allocation2 + $0x8] sm:$0xff] %vm399, 0.0
        %402 = vst.msk [vmem:[#allocation2 + $0x10] sm:$0xff] %vm399, 0.0
        %403 = vst.msk [vmem:[#allocation2 + $0x18] sm:$0xff] %vm399, 0.0
      $region44: #{tpu_custom_call.1} parent=39 // pred_fallthru
        _
      %v404 = vld [vmem:[%s347] sm:$0xf]
      %v405 = vld [vmem:[%s347 + $0x4] sm:$0xf]
      %v406 = vld [vmem:[%s347 + $0x8] sm:$0xf]
      %v407 = vld [vmem:[%s347 + $0xc] sm:$0xf]
      %v408 = vld [vmem:[%s358] sm:$0xf]
      %v409 = vld [vmem:[%s358 + $0x4] sm:$0xf]
      %v410 = vld [vmem:[%s358 + $0x8] sm:$0xf]
      %v411 = vld [vmem:[%s358 + $0xc] sm:$0xf]
      %v416 = vunpack.c.l.b16 %v404
      %v417 = vunpack.c.l.b16 %v405
      %v418 = vunpack.c.l.b16 %v406
      %v419 = vunpack.c.l.b16 %v407
      %v420 = vpack.c.b16 %v417, %v416
      %v421 = vpack.c.b16 %v419, %v418
      %v426 = vunpack.c.l.b16 %v408
      %v427 = vunpack.c.l.b16 %v409
      %v428 = vunpack.c.l.b16 %v410
      %v429 = vunpack.c.l.b16 %v411
      %v430 = vpack.c.b16 %v427, %v426
      %v431 = vpack.c.b16 %v429, %v428
      %vm434 = vcmask 261120
      %v436 = vsel %vm434, %v420, 0
      %v439 = vsel %vm434, %v421, 0
      %441 = vmatpush.bf16.msra.mxu0 0
      %442 = vmatpush.bf16.msra.mxu0 0
      %443 = vmatpush.bf16.msra.mxu0 0
      %444 = vmatpush.bf16.msra.mxu0 0
      %445 = vmatpush.bf16.msra.mxu0 0
      %446 = vmatpush.bf16.msra.mxu0 0
      %447 = vmatpush.bf16.msra.mxu0 %v431
      %448 = vmatpush.bf16.msra.mxu0 %v430
      %449 = vmatmul.bf16.gmra.mxu0 %v436
      %v450 = vpop.f32.mrf.mxu0
      %v451 = vadd.f32 0.0, %v450
      %v452 = vpop.f32.mrf.mxu0
      %v453 = vadd.f32 0.0, %v452
      %454 = vmatmul.bf16.gmra.mxu0 %v439
      %v455 = vpop.f32.mrf.mxu0
      %v456 = vadd.f32 0.0, %v455
      %v457 = vpop.f32.mrf.mxu0
      %v458 = vadd.f32 0.0, %v457
      %459 = vdwg.mxu0
      %v460 = vld [vmem:[%s369] sm:$0xf]
      %v461 = vld [vmem:[%s369 + $0x4] sm:$0xf]
      %v462 = vld [vmem:[%s369 + $0x8] sm:$0xf]
      %v463 = vld [vmem:[%s369 + $0xc] sm:$0xf]
      %v468 = vunpack.c.l.b16 %v460
      %v469 = vunpack.c.l.b16 %v461
      %v470 = vunpack.c.l.b16 %v462
      %v471 = vunpack.c.l.b16 %v463
      %v472 = vpack.c.b16 %v469, %v468
      %v473 = vpack.c.b16 %v471, %v470
      %476 = vmatpush.bf16.msra.mxu0 0
      %477 = vmatpush.bf16.msra.mxu0 0
      %478 = vmatpush.bf16.msra.mxu0 0
      %479 = vmatpush.bf16.msra.mxu0 0
      %480 = vmatpush.bf16.msra.mxu0 0
      %481 = vmatpush.bf16.msra.mxu0 0
      %482 = vmatpush.bf16.msra.mxu0 %v473
      %483 = vmatpush.bf16.msra.mxu0 %v472
      %484 = vmatmul.bf16.gmra.mxu0 %v436
      %v485 = vpop.f32.mrf.mxu0
      %v486 = vadd.f32 0.0, %v485
      %v487 = vpop.f32.mrf.mxu0
      %v488 = vadd.f32 0.0, %v487
      %489 = vmatmul.bf16.gmra.mxu0 %v439
      %v490 = vpop.f32.mrf.mxu0
      %v491 = vadd.f32 0.0, %v490
      %v492 = vpop.f32.mrf.mxu0
      %v493 = vadd.f32 0.0, %v492
      %494 = vdwg.mxu0
      %v495 = vxor.u32 %v451, 2147483648
      %v496 = vxor.u32 %v453, 2147483648
      %v497 = vxor.u32 %v456, 2147483648
      %v498 = vxor.u32 %v458, 2147483648
      %v499 = vmul.f32 %v495, 1.442695
      %v500 = vpow.pop %v499
      %v501 = vmul.f32 %v496, 1.442695
      %v502 = vpow.pop %v501
      %v503 = vmul.f32 %v497, 1.442695
      %v504 = vpow.pop %v503
      %v505 = vmul.f32 %v498, 1.442695
      %v506 = vpow.pop %v505
      %v507 = vadd.f32 %v500, 1.0
      %v508 = vadd.f32 %v502, 1.0
      %v509 = vadd.f32 %v504, 1.0
      %v510 = vadd.f32 %v506, 1.0
      %v511 = vrcp.pop %v507
      %v512 = vmul.f32 %v507, %v511
      %v513 = vsub.f32 1.0, %v512
      %v514 = vmul.f32 %v511, %v513
      %v515 = vadd.f32 %v511, %v514
      %vm516 = vweird.f32 %v507
      %vm517 = vweird.f32 %v511
      %vm518 = vmor %vm516, %vm517
      %v519 = vsel %vm518, %v511, %v515
      %v520 = vand.u32 2147483647, %v507
      %vm521 = vcmp.eq.f32.partialorder %v520, 8.507059e+37
      %v522 = vand.u32 %v507, 2147483648
      %v523 = vor.u32 1.1754944e-38, %v522
      %v524 = vsel %vm521, %v523, %v519
      %v525 = vmul.f32 1.0, %v524
      %v526 = vrcp.pop %v508
      %v527 = vmul.f32 %v508, %v526
      %v528 = vsub.f32 1.0, %v527
      %v529 = vmul.f32 %v526, %v528
      %v530 = vadd.f32 %v526, %v529
      %vm531 = vweird.f32 %v508
      %vm532 = vweird.f32 %v526
      %vm533 = vmor %vm531, %vm532
      %v534 = vsel %vm533, %v526, %v530
      %v535 = vand.u32 2147483647, %v508
      %vm536 = vcmp.eq.f32.partialorder %v535, 8.507059e+37
      %v537 = vand.u32 %v508, 2147483648
      %v538 = vor.u32 1.1754944e-38, %v537
      %v539 = vsel %vm536, %v538, %v534
      %v540 = vmul.f32 1.0, %v539
      %v541 = vrcp.pop %v509
      %v542 = vmul.f32 %v509, %v541
      %v543 = vsub.f32 1.0, %v542
      %v544 = vmul.f32 %v541, %v543
      %v545 = vadd.f32 %v541, %v544
      %vm546 = vweird.f32 %v509
      %vm547 = vweird.f32 %v541
      %vm548 = vmor %vm546, %vm547
      %v549 = vsel %vm548, %v541, %v545
      %v550 = vand.u32 2147483647, %v509
      %vm551 = vcmp.eq.f32.partialorder %v550, 8.507059e+37
      %v552 = vand.u32 %v509, 2147483648
      %v553 = vor.u32 1.1754944e-38, %v552
      %v554 = vsel %vm551, %v553, %v549
      %v555 = vmul.f32 1.0, %v554
      %v556 = vrcp.pop %v510
      %v557 = vmul.f32 %v510, %v556
      %v558 = vsub.f32 1.0, %v557
      %v559 = vmul.f32 %v556, %v558
      %v560 = vadd.f32 %v556, %v559
      %vm561 = vweird.f32 %v510
      %vm562 = vweird.f32 %v556
      %vm563 = vmor %vm561, %vm562
      %v564 = vsel %vm563, %v556, %v560
      %v565 = vand.u32 2147483647, %v510
      %vm566 = vcmp.eq.f32.partialorder %v565, 8.507059e+37
      %v567 = vand.u32 %v510, 2147483648
      %v568 = vor.u32 1.1754944e-38, %v567
      %v569 = vsel %vm566, %v568, %v564
      %v570 = vmul.f32 1.0, %v569
      %v571 = vmul.f32 %v451, %v525
      %v572 = vmul.f32 %v453, %v540
      %v573 = vmul.f32 %v456, %v555
      %v574 = vmul.f32 %v458, %v570
      %v575 = vmul.f32 %v571, %v486
      %v576 = vmul.f32 %v572, %v488
      %v577 = vmul.f32 %v573, %v491
      %v578 = vmul.f32 %v574, %v493
      %v579 = vld [vmem:[%s386] sm:$0xff]
      %v580 = vld [vmem:[%s386 + $0x8] sm:$0xff]
      %v581 = vld [vmem:[%s386 + $0x10] sm:$0xff]
      %v582 = vld [vmem:[%s386 + $0x18] sm:$0xff]
      %584 = vset.pattern.permute.xlu0 0
      %585 = vperm.xlu0 %584, %v579
      %v586 = vpop.permute.xlu0 %585
      %589 = vset.pattern.permute.xlu0 0
      %590 = vperm.xlu0 %589, %v580
      %v591 = vpop.permute.xlu0 %590
      %594 = vset.pattern.permute.xlu0 0
      %595 = vperm.xlu0 %594, %v581
      %v596 = vpop.permute.xlu0 %595
      %599 = vset.pattern.permute.xlu0 0
      %600 = vperm.xlu0 %599, %v582
      %v601 = vpop.permute.xlu0 %600
      %v603 = vmul.f32 %v575, %v586
      %v604 = vmul.f32 %v576, %v591
      %v605 = vmul.f32 %v577, %v596
      %v606 = vmul.f32 %v578, %v601
      %v607 = vld [vmem:[#allocation2] sm:$0xff]
      %v608 = vld [vmem:[#allocation2 + $0x8] sm:$0xff]
      %v609 = vld [vmem:[#allocation2 + $0x10] sm:$0xff]
      %v610 = vld [vmem:[#allocation2 + $0x18] sm:$0xff]
      %v611 = vpack.c.bf16 %v604, %v603
      %v612 = vpack.c.bf16 %v606, %v605
      %v613 = vld [vmem:[%s380] sm:$0xf]
      %v614 = vld [vmem:[%s380 + $0x4] sm:$0xf]
      %v615 = vld [vmem:[%s380 + $0x8] sm:$0xf]
      %v616 = vld [vmem:[%s380 + $0xc] sm:$0xf]
      %v617 = vld [vmem:[%s380 + $0x10] sm:$0xf]
      %v618 = vld [vmem:[%s380 + $0x14] sm:$0xf]
      %v619 = vld [vmem:[%s380 + $0x18] sm:$0xf]
      %v620 = vld [vmem:[%s380 + $0x1c] sm:$0xf]
      %v629 = vunpack.c.l.b16 %v613
      %v630 = vunpack.c.l.b16 %v614
      %v631 = vunpack.c.l.b16 %v615
      %v632 = vunpack.c.l.b16 %v616
      %v633 = vunpack.c.l.b16 %v617
      %v634 = vunpack.c.l.b16 %v618
      %v635 = vunpack.c.l.b16 %v619
      %v636 = vunpack.c.l.b16 %v620
      %v637 = vpack.c.b16 %v630, %v629
      %v638 = vpack.c.b16 %v632, %v631
      %v639 = vpack.c.b16 %v634, %v633
      %v640 = vpack.c.b16 %v636, %v635
      %vm645 = vcmask 523264
      %v647 = vsel %vm645, %v611, 0
      %v650 = vsel %vm645, %v612, 0
      %652 = vmatpush.bf16.msra.mxu0 0
      %653 = vmatpush.bf16.msra.mxu0 0
      %654 = vmatpush.bf16.msra.mxu0 0
      %655 = vmatpush.bf16.msra.mxu0 0
      %656 = vmatpush.bf16.msra.mxu0 %v640
      %657 = vmatpush.bf16.msra.mxu0 %v639
      %658 = vmatpush.bf16.msra.mxu0 %v638
      %659 = vmatpush.bf16.msra.mxu0 %v637
      %660 = vmatmul.bf16.gmra.mxu0 %v647
      %v661 = vpop.f32.mrf.mxu0
      %v662 = vadd.f32 0.0, %v661
      %v663 = vpop.f32.mrf.mxu0
      %v664 = vadd.f32 0.0, %v663
      %665 = vmatmul.bf16.gmra.mxu0 %v650
      %v666 = vpop.f32.mrf.mxu0
      %v667 = vadd.f32 0.0, %v666
      %v668 = vpop.f32.mrf.mxu0
      %v669 = vadd.f32 0.0, %v668
      %670 = vdwg.mxu0
      %v671 = vadd.f32 %v607, %v662
      %v672 = vadd.f32 %v608, %v664
      %v673 = vadd.f32 %v609, %v667
      %v674 = vadd.f32 %v610, %v669
      %675 = vst.msk [vmem:[#allocation2] sm:$0xff] %vm434, %v671
      %676 = vst.msk [vmem:[#allocation2 + $0x8] sm:$0xff] %vm434, %v672
      %677 = vst.msk [vmem:[#allocation2 + $0x10] sm:$0xff] %vm434, %v673
      %678 = vst.msk [vmem:[#allocation2 + $0x18] sm:$0xff] %vm434, %v674
      // Predicated region
      $region45: #{tpu_custom_call.1} parent=39 // pred_check
        %p679 = pneg %p395
      $region46: #{tpu_custom_call.1} parent=39 // pred_check_branch
        %681 = sbr.rel (%p679) target = $region48
      $region47: #{tpu_custom_call.1} parent=39 // pred_region
        %v682 = vld [vmem:[#allocation2] sm:$0xff]
        %v683 = vld [vmem:[#allocation2 + $0x8] sm:$0xff]
        %v684 = vld [vmem:[#allocation2 + $0x10] sm:$0xff]
        %v685 = vld [vmem:[#allocation2 + $0x18] sm:$0xff]
        %686 = vst.msk [vmem:[%s392] sm:$0xff] %vm434, %v682
        %687 = vst.msk [vmem:[%s392 + $0x8] sm:$0xff] %vm434, %v683
        %688 = vst.msk [vmem:[%s392 + $0x10] sm:$0xff] %vm434, %v684
        %689 = vst.msk [vmem:[%s392 + $0x18] sm:$0xff] %vm434, %v685
      $region48: #{tpu_custom_call.1} parent=39 // pred_fallthru
        _
      %s690 = smul.u32 4, %s29
      %p691 = scmp.lt.s32.totalorder %s690, 19
      %s692 = scalar_select %p691, %s690, 19
      %s693 = smul.addr %s692, 8
      %s694 = scalar_lea.vmem %s6, %s693
      // Predicated region
      $region49: #{tpu_custom_call.1} parent=39 // pred_check
        %p695 = pneg %p197
      $region50: #{tpu_custom_call.1} parent=39 // pred_check_branch
        %697 = sbr.rel (%p695) target = $region52
      $region51: #{tpu_custom_call.1} parent=39 // pred_region
        %s698 = smul.u32 4, %s29
      $region52: #{tpu_custom_call.1} parent=39 // pred_fallthru
        _
    $region40: #{tpu_custom_call.1} parent=5 // pred_fallthru
      _
    %p699 = scmp.le.s32.totalorder 2, %s20
    // Predicated region
    $region53: #{tpu_custom_call.1} parent=5 // pred_check
      %p700 = pneg %p699
    $region54: #{tpu_custom_call.1} parent=5 // pred_check_branch
      %702 = sbr.rel (%p700) target = $region56
    $region55: #{tpu_custom_call.1} parent=5 // pred_region
      %s703 = ssub.s32 %s20, 2
      // Predicated region
      $region57: #{tpu_custom_call.1} parent=55 // pred_check
        %p704 = pneg %p203
      $region58: #{tpu_custom_call.1} parent=55 // pred_check_branch
        %706 = sbr.rel (%p704) target = $region60
      $region59: #{tpu_custom_call.1} parent=55 // pred_region
        %s707 = smul.u32 4, %s31
        %p708 = scmp.lt.s32.totalorder %s707, 19
        %s709 = scalar_select %p708, %s707, 19
        %s710 = smul.addr %s709, 8
        %s711 = scalar_lea.vmem %s6, %s710
      $region60: #{tpu_custom_call.1} parent=55 // pred_fallthru
        _
    $region56: #{tpu_custom_call.1} parent=5 // pred_fallthru
      _
  $region6: #{tpu_custom_call.1} parent=0 // loop_footer
    %s24 = sadd.s32 1, %s20
  $region7: #{tpu_custom_call.1} parent=0 // loop_footer_branch
    %19 = sbr.rel target = $region3
  $region8: #{tpu_custom_call.1} parent=0 // loop_exit
    _

</llo_original>
